<compile_context>
chip_gen: v7x
topology: tpu7x:2x2x1
jax: 0.10.0
libtpu: 0.0.40
codegen_flags: <defaults>
</compile_context>

<pallas_src>
import functools

import jax
import jax.numpy as jnp
from jax.experimental import pallas as pl
from jax.experimental.pallas import tpu as pltpu

_LANE = 128
_SUBLANE = 8


def _round_up(x, m):
    return (x + m - 1) // m * m


def _pick_tile(dim, cap, align):
    """Full (aligned) dim if it fits under `cap`; otherwise the multiple of
    `align` <= cap minimizing total padding (prefer larger tiles on ties)."""
    d = _round_up(max(int(dim), 1), align)
    if d <= cap:
        return d
    best_c, best_pad = align, _round_up(d, align)
    c = align
    while c <= cap:
        pad = _round_up(d, c)
        if pad < best_pad or (pad == best_pad and c > best_c):
            best_c, best_pad = c, pad
        c += align
    return best_c


def _vmem_budget_bytes():
    """Per-generation scoped-VMEM limit: ~75% of physical, capped at 100 MiB.
    v5e/v6e: 128 MiB physical -> 96 MiB; v7x: 64 MiB -> 48 MiB."""
    try:
        cap = pltpu.get_tpu_info().vmem_capacity_bytes
    except Exception:
        cap = 64 * 1024 * 1024  # conservative (v7x-sized) fallback
    return min(int(cap * 0.75), 100 * 1024 * 1024)


def _working_set_bytes(tm, tn, tk, in_bytes):
    # 2x-buffered x and w tiles, 2x-buffered f32 out tile, resident bias row.
    # No separate accumulator scratch (we accumulate into o_ref).
    return (2 * tm * tk * in_bytes + 2 * tk * tn * in_bytes
            + 2 * tm * tn * 4 + 2 * tn * 4)


def plan_tiles(batch, d_in, d_out, *, tm_max=512, tn_max=512, tk_max=2048,
               in_bytes=2):
    """Pick (tm, tn, tk) and the vmem limit for this generation/problem."""
    vmem_limit = _vmem_budget_bytes()
    budget = int(vmem_limit * 0.85)
    tm = _pick_tile(batch, tm_max, _SUBLANE)
    tk = _pick_tile(d_in, tk_max, _LANE)
    tn = _pick_tile(d_out, tn_max, _LANE)
    # Shrink K first, then N, then M if the working set overflows the budget
    # (matters on v7x's 64 MiB VMEM).
    while _working_set_bytes(tm, tn, tk, in_bytes) > budget and tk > _LANE:
        tk = max(_LANE, _round_up(tk // 2, _LANE))
    while _working_set_bytes(tm, tn, tk, in_bytes) > budget and tn > _LANE:
        tn = max(_LANE, _round_up(tn // 2, _LANE))
    while _working_set_bytes(tm, tn, tk, in_bytes) > budget and tm > _SUBLANE:
        tm = max(_SUBLANE, _round_up(tm // 2, _SUBLANE))
    return tm, tn, tk, vmem_limit


def prepare_langy_params(w, b, *, tn, tk, compute_dtype=jnp.bfloat16):
    """Cast + pad weights/bias ONCE (hoisted out of the per-call hot path)."""
    d_in, d_out = w.shape
    k_pad = _round_up(_round_up(d_in, _LANE), tk)
    n_pad = _round_up(_round_up(d_out, _LANE), tn)
    w_p = w.astype(compute_dtype)
    if (k_pad, n_pad) != (d_in, d_out):
        w_p = jnp.pad(w_p, ((0, k_pad - d_in), (0, n_pad - d_out)))
    b_p = b.astype(jnp.float32)
    if n_pad != d_out:
        b_p = jnp.pad(b_p, (0, n_pad - d_out))
    return w_p, b_p.reshape(1, n_pad)


def _langy_kernel(seed_ref, x_ref, w_ref, b_ref, o_ref, *, p_dropout):
    # All program_id / scalar-prefetch reads happen at the TOP of the body
    # (never inside pl.when), so the kernel works both under Mosaic and the
    # interpret backend.
    i = pl.program_id(0)
    j = pl.program_id(1)
    k = pl.program_id(2)
    nk = pl.num_programs(2)
    tm, tn = o_ref.shape

    if p_dropout > 0.0:            # Python float -> resolved at trace time
        seed = seed_ref[0]
        row0 = i * tm              # global row offset of this output tile
        col0 = j * tn              # global col offset of this output tile

    @pl.when(k == 0)
    def _():
        o_ref[...] = jnp.zeros_like(o_ref)

    # MXU matmul on bf16 tiles; f32 accumulation directly into the resident
    # output block (out index_map is constant over k) -- no VMEM scratch.
    o_ref[...] += jnp.dot(x_ref[...], w_ref[...],
                          preferred_element_type=jnp.float32)

    @pl.when(k == nk - 1)
    def _():
        # Epilogue once per output tile: bias + ReLU (+ dropout), all in f32.
        y = o_ref[...] + b_ref[...]
        y = jnp.maximum(y, 0.0)
        if p_dropout > 0.0:
            # Tiling-independent counter hash of (seed, global row, global col)
            # -> same mask for any tile configuration / generation.
            rows = jax.lax.broadcasted_iota(jnp.int32, (tm, tn), 0) + row0
            cols = jax.lax.broadcasted_iota(jnp.int32, (tm, tn), 1) + col0
            h = ((rows.astype(jnp.uint32) * jnp.uint32(0x9E3779B1))
                 ^ (cols.astype(jnp.uint32) * jnp.uint32(0x85EBCA77))
                 ^ (seed.astype(jnp.uint32) * jnp.uint32(0x27D4EB2F)))
            h = h ^ (h >> jnp.uint32(16))
            h = h * jnp.uint32(0x7FEB352D)
            h = h ^ (h >> jnp.uint32(15))
            h = h * jnp.uint32(0x846CA68B)
            h = h ^ (h >> jnp.uint32(16))
            # 23 uniform bits, compared against an integer threshold.
            r = jax.lax.bitcast_convert_type(h, jnp.int32) & jnp.int32(0x007FFFFF)
            thresh = min(int(round(float(p_dropout) * float(1 << 23))), 1 << 23)
            keep = r >= jnp.int32(thresh)
            scale = jnp.float32(1.0 / (1.0 - float(p_dropout)))
            y = jnp.where(keep, y * scale, jnp.zeros_like(y))
        o_ref[...] = y.astype(o_ref.dtype)


def langy_block_apply(x, w_p, b_p, *, d_out, tm, tn, tk, vmem_limit,
                      p_dropout=0.0, seed=0, compute_dtype=jnp.bfloat16):
    """Hot path: x [batch, d_in] f32, w_p/b_p pre-padded/cast via
    prepare_langy_params. Returns [batch, d_out] f32."""
    batch, d_in = x.shape
    k_pad, n_pad = w_p.shape
    assert k_pad % tk == 0 and n_pad % tn == 0
    m_pad = _round_up(_round_up(batch, _SUBLANE), tm)

    x_p = x.astype(compute_dtype)
    if (m_pad, k_pad) != (batch, d_in):
        x_p = jnp.pad(x_p, ((0, m_pad - batch), (0, k_pad - d_in)))
    seed_arr = jnp.asarray([seed], dtype=jnp.int32)

    grid = (m_pad // tm, n_pad // tn, k_pad // tk)
    kernel = functools.partial(_langy_kernel, p_dropout=float(p_dropout))

    out_padded = pl.pallas_call(
        kernel,
        out_shape=jax.ShapeDtypeStruct((m_pad, n_pad), jnp.float32),
        grid_spec=pltpu.PrefetchScalarGridSpec(
            num_scalar_prefetch=1,  # seed lives in SMEM
            grid=grid,
            in_specs=[
                pl.BlockSpec((tm, tk), lambda i, j, k, *_: (i, k)),
                pl.BlockSpec((tk, tn), lambda i, j, k, *_: (k, j)),
                pl.BlockSpec((1, tn), lambda i, j, k, *_: (0, j)),
            ],
            out_specs=pl.BlockSpec((tm, tn), lambda i, j, k, *_: (i, j)),
        ),
        compiler_params=pltpu.CompilerParams(
            dimension_semantics=("parallel", "parallel", "arbitrary"),
            vmem_limit_bytes=int(vmem_limit),
        ),
    )(seed_arr, x_p, w_p, b_p)

    out = out_padded
    if (m_pad, n_pad) != (batch, d_out):
        out = out[:batch, :d_out]
    return out


def langy_block(x, w, b, *, p_dropout=0.0, seed=0,
                compute_dtype=jnp.bfloat16,
                tm_max=512, tn_max=512, tk_max=2048):
    """Convenience wrapper: y = Dropout(ReLU(x @ w + b)).

    x: [batch, input_nodes] f32
    w: [input_nodes, output_nodes] f32  (transpose of torch Linear.weight)
    b: [output_nodes] f32
    In a real model call plan_tiles/prepare_langy_params once and reuse the
    prepared (padded, bf16) weights across steps.
    """
    assert 0.0 <= float(p_dropout) < 1.0
    batch, d_in = x.shape
    d_in_w, d_out = w.shape
    assert d_in == d_in_w
    in_bytes = jnp.dtype(compute_dtype).itemsize
    tm, tn, tk, vmem_limit = plan_tiles(batch, d_in, d_out,
                                        tm_max=tm_max, tn_max=tn_max,
                                        tk_max=tk_max, in_bytes=in_bytes)
    w_p, b_p = prepare_langy_params(w, b, tn=tn, tk=tk,
                                    compute_dtype=compute_dtype)
    return langy_block_apply(x, w_p, b_p, d_out=d_out, tm=tm, tn=tn, tk=tk,
                             vmem_limit=vmem_limit, p_dropout=p_dropout,
                             seed=seed, compute_dtype=compute_dtype)


if __name__ == "__main__":
    # Deterministic synthetic parameters + input (no checkpoint).
    batch = 8
    input_nodes = 32
    output_nodes = 32

    key = jax.random.PRNGKey(0)
    kx, kw, kb = jax.random.split(key, 3)

    x = jax.random.normal(kx, (batch, input_nodes), dtype=jnp.float32)
    # nn.Linear default init: U(-1/sqrt(in), 1/sqrt(in))
    bound = 1.0 / (input_nodes ** 0.5)
    w = jax.random.uniform(kw, (input_nodes, output_nodes),
                           minval=-bound, maxval=bound, dtype=jnp.float32)
    b = jax.random.uniform(kb, (output_nodes,),
                           minval=-bound, maxval=bound, dtype=jnp.float32)

    ref = jnp.maximum(x @ w + b[None, :], 0.0)

    # p=0 path (module default): deterministic; bf16 MXU inputs -> loose tol.
    out = jax.block_until_ready(langy_block(x, w, b, p_dropout=0.0, seed=0))
    assert out.shape == (batch, output_nodes)
    assert jnp.allclose(out, ref, atol=2e-2, rtol=1e-2), "p=0 mismatch"

    # Dropout smoke test: survivors must equal scale * ReLU output.
    p = 0.5
    out_d = jax.block_until_ready(langy_block(x, w, b, p_dropout=p, seed=123))
    assert out_d.shape == (batch, output_nodes)
    assert bool(jnp.all(jnp.isfinite(out_d)))
    nz = out_d != 0.0
    scaled_ref = jnp.where(nz, ref / (1.0 - p), 0.0)
    assert jnp.allclose(jnp.where(nz, out_d, 0.0), scaled_ref,
                        atol=5e-2, rtol=2e-2), \
        "dropout survivors not scaled correctly"

    print("KERNEL_OK")
</pallas_src>

<mosaic_0001>
module attributes {stable_mosaic.version = 11 : i64} {
  func.func @_langy_kernel(%arg0: i32, %arg1: i32, %arg2: i32, %arg3: memref<1xi32, #tpu.memory_space<smem>>, %arg4: memref<8x128xbf16, #tpu.memory_space<vmem>>, %arg5: memref<128x128xbf16, #tpu.memory_space<vmem>>, %arg6: memref<1x128xf32, #tpu.memory_space<vmem>>, %arg7: memref<8x128xf32, #tpu.memory_space<vmem>>) attributes {dimension_semantics = [#tpu.dimension_semantics<parallel>, #tpu.dimension_semantics<parallel>, #tpu.dimension_semantics<arbitrary>], iteration_bounds = array<i64: 1, 1, 1>, scalar_prefetch = 1 : i64, scratch_operands = 0 : i64, tpu.core_type = #tpu.core_type<tc>, window_params = [{transform_indices = @transform_0, window_bounds = array<i64: 8, 128>}, {transform_indices = @transform_1, window_bounds = array<i64: 128, 128>}, {transform_indices = @transform_2, window_bounds = array<i64: 1, 128>}, {transform_indices = @transform_3, window_bounds = array<i64: 8, 128>}]} {
    %c0_i32 = arith.constant 0 : i32
    %0 = arith.cmpi eq, %arg2, %c0_i32 : i32
    %1 = arith.extui %0 : i1 to i32
    %c0_i32_0 = arith.constant 0 : i32
    %2 = arith.cmpi ne, %1, %c0_i32_0 : i32
    scf.if %2 {
      %cst_10 = arith.constant 0.000000e+00 : f32
      %12 = vector.broadcast %cst_10 : f32 to vector<8x128xf32>
      %c0_11 = arith.constant 0 : index
      %c0_12 = arith.constant 0 : index
      %13 = vector.load %arg7[%c0_11, %c0_12] : memref<8x128xf32, #tpu.memory_space<vmem>>, vector<8x128xf32>
      tpu.vector_store %arg7[%c0_11, %c0_12], %12 {strides = array<i32>} : memref<8x128xf32, #tpu.memory_space<vmem>>, vector<8x128xf32>,
    } else {
    }
    %c0 = arith.constant 0 : index
    %c0_1 = arith.constant 0 : index
    %3 = vector.load %arg7[%c0, %c0_1] : memref<8x128xf32, #tpu.memory_space<vmem>>, vector<8x128xf32>
    %c0_2 = arith.constant 0 : index
    %c0_3 = arith.constant 0 : index
    %4 = vector.load %arg4[%c0_2, %c0_3] : memref<8x128xbf16, #tpu.memory_space<vmem>>, vector<8x128xbf16>
    %c0_4 = arith.constant 0 : index
    %c0_5 = arith.constant 0 : index
    %5 = vector.load %arg5[%c0_4, %c0_5] : memref<128x128xbf16, #tpu.memory_space<vmem>>, vector<128x128xbf16>
    %cst = arith.constant dense<0.000000e+00> : vector<8x128xf32>
    %6 = tpu.matmul %4, %5, %cst {dimension_numbers = #tpu.dot_dimension_numbers<[1], [0], [0], [1], [0, 0, 1, 1], [], []>} : vector<8x128xbf16>, vector<128x128xbf16>, vector<8x128xf32> -> vector<8x128xf32>
    %7 = arith.addf %3, %6 : vector<8x128xf32>
    %c0_6 = arith.constant 0 : index
    %c0_7 = arith.constant 0 : index
    %8 = vector.load %arg7[%c0_6, %c0_7] : memref<8x128xf32, #tpu.memory_space<vmem>>, vector<8x128xf32>
    tpu.vector_store %arg7[%c0_6, %c0_7], %7 {strides = array<i32>} : memref<8x128xf32, #tpu.memory_space<vmem>>, vector<8x128xf32>,
    %c0_i32_8 = arith.constant 0 : i32
    %9 = arith.cmpi eq, %arg2, %c0_i32_8 : i32
    %10 = arith.extui %9 : i1 to i32
    %c0_i32_9 = arith.constant 0 : i32
    %11 = arith.cmpi ne, %10, %c0_i32_9 : i32
    scf.if %11 {
      %c0_10 = arith.constant 0 : index
      %c0_11 = arith.constant 0 : index
      %12 = vector.load %arg7[%c0_10, %c0_11] : memref<8x128xf32, #tpu.memory_space<vmem>>, vector<8x128xf32>
      %c0_12 = arith.constant 0 : index
      %c0_13 = arith.constant 0 : index
      %13 = vector.load %arg6[%c0_12, %c0_13] : memref<1x128xf32, #tpu.memory_space<vmem>>, vector<1x128xf32>
      %14 = vector.broadcast %13 : vector<1x128xf32> to vector<8x128xf32>
      %15 = arith.addf %12, %14 : vector<8x128xf32>
      %cst_14 = arith.constant 0.000000e+00 : f32
      %16 = vector.broadcast %cst_14 : f32 to vector<8x128xf32>
      %17 = arith.maximumf %15, %16 : vector<8x128xf32>
      %c0_15 = arith.constant 0 : index
      %c0_16 = arith.constant 0 : index
      %18 = vector.load %arg7[%c0_15, %c0_16] : memref<8x128xf32, #tpu.memory_space<vmem>>, vector<8x128xf32>
      tpu.vector_store %arg7[%c0_15, %c0_16], %17 {strides = array<i32>} : memref<8x128xf32, #tpu.memory_space<vmem>>, vector<8x128xf32>,
    } else {
    }
    return
  }
  func.func @transform_0(%arg0: i32, %arg1: i32, %arg2: i32, %arg3: memref<1xi32, #tpu.memory_space<smem>>) -> (i32, i32) {
    %c0_i32 = arith.constant 0 : i32
    return %arg0, %arg2 : i32, i32
  }
  func.func @transform_1(%arg0: i32, %arg1: i32, %arg2: i32, %arg3: memref<1xi32, #tpu.memory_space<smem>>) -> (i32, i32) {
    %c0_i32 = arith.constant 0 : i32
    return %arg2, %arg1 : i32, i32
  }
  func.func @transform_2(%arg0: i32, %arg1: i32, %arg2: i32, %arg3: memref<1xi32, #tpu.memory_space<smem>>) -> (i32, i32) {
    %c0_i32 = arith.constant 0 : i32
    %c0_i32_0 = arith.constant 0 : i32
    return %c0_i32, %arg1 : i32, i32
  }
  func.func @transform_3(%arg0: i32, %arg1: i32, %arg2: i32, %arg3: memref<1xi32, #tpu.memory_space<smem>>) -> (i32, i32) {
    %c0_i32 = arith.constant 0 : i32
    return %arg0, %arg1 : i32, i32
  }
}

</mosaic_0001>

<llo_original>
// kernel: tpu_custom_call.1
$region0: #{tpu_custom_call.1}
  #allocation0 [shape = 'u32[]', space=smem, size = 0x4, offset = 0x4, fixed_abs, tag = 'smem constant byte address 0x4 - core index']
  #allocation1 [shape = 'u32[144,128]{1,0:T(1,128)}', space=vmem, size = 0x12000, scoped, tag = 'internal scratch']
  #allocation2 [shape = 's32[1]{0}', space=sflag, size = 0x4, scoped, tag = 'scoped memory for tpu_custom_call.1']
  #allocation3 [shape = 's32[1]{0:T(128)S(6)}', space=smem, size = 0x200, scoped, tag = 'prefetched SMEM operand 0']
  %s0 = inlined_call_operand.<no memory space> [shape: s32[1], index: 0, kind: input, shape index: {}]
  %s1 = inlined_call_operand.hbm [shape: bf16[8,128], index: 1, kind: input, shape index: {}]
  %s2 = inlined_call_operand.hbm [shape: bf16[128,128], index: 2, kind: input, shape index: {}]
  %s3 = inlined_call_operand.vmem [shape: f32[1,128], index: 3, kind: input, shape index: {}]
  %s4 = inlined_call_operand.hbm [shape: f32[8,128], index: 4, kind: output, shape index: {}]
  %s5 = sld [smem:[#allocation0]]
  $region38: #{tpu_custom_call.1} parent=0
    _
  %s7 = ssub.s32 1, %s5
  %s8 = scalar_select 0, %s7, %s5
  %9 = sst [smem:[#allocation3]] %s0
  $region1: #{tpu_custom_call.1} parent=0
    #allocation4 [shape = 'u8[2048]{0}', space=vmem, size = 0x800, scoped, tag = 'input window, operand 1, single buffered']
    #allocation5 [shape = 's32[1]{0}', space=sflag, size = 0x4, scoped, tag = 'scoped memory for tpu_custom_call.1']
    #allocation6 [shape = 's32[1]{0}', space=sflag, size = 0x4, scoped, tag = 'scoped memory for tpu_custom_call.1']
    #allocation7 [shape = 'u8[32768]{0}', space=vmem, size = 0x8000, scoped, tag = 'input window, operand 2, single buffered']
    #allocation8 [shape = 's32[1]{0}', space=sflag, size = 0x4, scoped, tag = 'scoped memory for tpu_custom_call.1']
    #allocation9 [shape = 'u8[4096]{0}', space=vmem, size = 0x1000, scoped, tag = 'output window, operand 0, single buffered']
    %10 = vsyncpa [#allocation5], 0
    %11 = vsyncpa [#allocation8], 0
    %12 = vsyncpa [#allocation6], 0
    // Predicated region
    $region2: #{tpu_custom_call.1} parent=1 // pred_check
      _
    $region3: #{tpu_custom_call.1} parent=1 // pred_check_branch
      %14 = sbr.rel (0) target = $region5
    $region4: #{tpu_custom_call.1} parent=1 // pred_region
      %s16 = ssub.s32 64, 64
      %17 = vsyncadd [#allocation5], %s16
      %s19 = sshll.u32 [#allocation4], 4
      %s20 = int_to_ptr.vmem [resolvable:$true] %s19
      %22 = dma.hbm_to_vmem [thread:$0]  %s1, 64, %s20, [#allocation5]
    $region5: #{tpu_custom_call.1} parent=1 // pred_fallthru
      _
    // Predicated region
    $region6: #{tpu_custom_call.1} parent=1 // pred_check
      _
    $region7: #{tpu_custom_call.1} parent=1 // pred_check_branch
      %24 = sbr.rel (0) target = $region9
    $region8: #{tpu_custom_call.1} parent=1 // pred_region
      %s26 = ssub.s32 1024, 1024
      %27 = vsyncadd [#allocation8], %s26
      %s28 = sshll.u32 [#allocation7], 4
      %s29 = int_to_ptr.vmem [resolvable:$true] %s28
      %34 = dma.hbm_to_vmem [thread:$0]  %s2, 1024, %s29, [#allocation8], 64, 64, 4
    $region9: #{tpu_custom_call.1} parent=1 // pred_fallthru
      _
    // Predicated region
    $region10: #{tpu_custom_call.1} parent=1 // pred_check
      _
    $region11: #{tpu_custom_call.1} parent=1 // pred_check_branch
      %36 = sbr.rel (0) target = $region13
    $region12: #{tpu_custom_call.1} parent=1 // pred_region
      _
    $region13: #{tpu_custom_call.1} parent=1 // pred_fallthru
      _
    // Predicated region
    $region14: #{tpu_custom_call.1} parent=1 // pred_check
      _
    $region15: #{tpu_custom_call.1} parent=1 // pred_check_branch
      %38 = sbr.rel (0) target = $region17
    $region16: #{tpu_custom_call.1} parent=1 // pred_region
      %39 = dma.done [#allocation5], 64
    $region17: #{tpu_custom_call.1} parent=1 // pred_fallthru
      _
    // Predicated region
    $region18: #{tpu_custom_call.1} parent=1 // pred_check
      _
    $region19: #{tpu_custom_call.1} parent=1 // pred_check_branch
      %41 = sbr.rel (0) target = $region21
    $region20: #{tpu_custom_call.1} parent=1 // pred_region
      %42 = dma.done [#allocation8], 1024
    $region21: #{tpu_custom_call.1} parent=1 // pred_fallthru
      _
    %p44 = scmp.eq.s32.totalorder 0, 0
    // Predicated region
    $region22: #{tpu_custom_call.1} parent=1 // pred_check
      %p45 = pneg %p44
    $region23: #{tpu_custom_call.1} parent=1 // pred_check_branch
      %47 = sbr.rel (%p45) target = $region25
    $region24: #{tpu_custom_call.1} parent=1 // pred_region
      %48 = vst [vmem:[#allocation9] sm:$0xff] 0.0
    $region25: #{tpu_custom_call.1} parent=1 // pred_fallthru
      _
    %v49 = vld [vmem:[#allocation9] sm:$0xff]
    %v50 = vld [vmem:[#allocation4] sm:$0xf]
    %v51 = vld [vmem:[#allocation7] sm:$0xf]
    %v52 = vld [vmem:[#allocation7 + $0x4] sm:$0xf]
    %v53 = vld [vmem:[#allocation7 + $0x8] sm:$0xf]
    %v54 = vld [vmem:[#allocation7 + $0xc] sm:$0xf]
    %v55 = vld [vmem:[#allocation7 + $0x10] sm:$0xf]
    %v56 = vld [vmem:[#allocation7 + $0x14] sm:$0xf]
    %v57 = vld [vmem:[#allocation7 + $0x18] sm:$0xf]
    %v58 = vld [vmem:[#allocation7 + $0x1c] sm:$0xf]
    %v59 = vld [vmem:[#allocation7 + $0x20] sm:$0xf]
    %v60 = vld [vmem:[#allocation7 + $0x24] sm:$0xf]
    %v61 = vld [vmem:[#allocation7 + $0x28] sm:$0xf]
    %v62 = vld [vmem:[#allocation7 + $0x2c] sm:$0xf]
    %v63 = vld [vmem:[#allocation7 + $0x30] sm:$0xf]
    %v64 = vld [vmem:[#allocation7 + $0x34] sm:$0xf]
    %v65 = vld [vmem:[#allocation7 + $0x38] sm:$0xf]
    %v66 = vld [vmem:[#allocation7 + $0x3c] sm:$0xf]
    %v83 = vunpack.c.l.b16 %v51
    %v84 = vunpack.c.l.b16 %v52
    %v85 = vunpack.c.l.b16 %v53
    %v86 = vunpack.c.l.b16 %v54
    %v87 = vunpack.c.l.b16 %v55
    %v88 = vunpack.c.l.b16 %v56
    %v89 = vunpack.c.l.b16 %v57
    %v90 = vunpack.c.l.b16 %v58
    %v91 = vunpack.c.l.b16 %v59
    %v92 = vunpack.c.l.b16 %v60
    %v93 = vunpack.c.l.b16 %v61
    %v94 = vunpack.c.l.b16 %v62
    %v95 = vunpack.c.l.b16 %v63
    %v96 = vunpack.c.l.b16 %v64
    %v97 = vunpack.c.l.b16 %v65
    %v98 = vunpack.c.l.b16 %v66
    %v99 = vpack.c.b16 %v84, %v83
    %v100 = vpack.c.b16 %v86, %v85
    %v101 = vpack.c.b16 %v88, %v87
    %v102 = vpack.c.b16 %v90, %v89
    %v103 = vpack.c.b16 %v92, %v91
    %v104 = vpack.c.b16 %v94, %v93
    %v105 = vpack.c.b16 %v96, %v95
    %v106 = vpack.c.b16 %v98, %v97
    %115 = vmatprep.subr.bf16.mxu0 0
    %116 = vmatpush1.bf16.msra.mxu0 %v99
    %117 = vmatprep.subr.bf16.mxu0 0
    %118 = vmatpush1.bf16.msra.mxu0 %v100
    %119 = vmatprep.subr.bf16.mxu0 0
    %120 = vmatpush1.bf16.msra.mxu0 %v101
    %121 = vmatprep.subr.bf16.mxu0 0
    %122 = vmatpush1.bf16.msra.mxu0 %v102
    %123 = vmatprep.subr.bf16.mxu0 0
    %124 = vmatpush1.bf16.msra.mxu0 %v103
    %125 = vmatprep.subr.bf16.mxu0 0
    %126 = vmatpush1.bf16.msra.mxu0 %v104
    %127 = vmatprep.subr.bf16.mxu0 0
    %128 = vmatpush1.bf16.msra.mxu0 %v105
    %129 = vmatprep.subr.bf16.mxu0 0
    %130 = vmatpush1.bf16.msra.mxu0 %v106
    %131 = vmatprep.subr.bf16.mxu0 0
    %132 = vmatpush1.bf16.msra.mxu0 0
    %133 = vmatprep.subr.bf16.mxu0 0
    %134 = vmatpush1.bf16.msra.mxu0 0
    %135 = vmatprep.subr.bf16.mxu0 0
    %136 = vmatpush1.bf16.msra.mxu0 0
    %137 = vmatprep.subr.bf16.mxu0 0
    %138 = vmatpush1.bf16.msra.mxu0 0
    %139 = vmatprep.subr.bf16.mxu0 0
    %140 = vmatpush1.bf16.msra.mxu0 0
    %141 = vmatprep.subr.bf16.mxu0 0
    %142 = vmatpush1.bf16.msra.mxu0 0
    %143 = vmatprep.subr.bf16.mxu0 0
    %144 = vmatpush1.bf16.msra.mxu0 0
    %145 = vmatprep.subr.bf16.mxu0 0
    %146 = vmatpush1.bf16.msra.mxu0 0
    %147 = vmatprep.mubr.bf16.mxu0 0
    %148 = vmatmul.mubr.bf16.gmra.mrb[0].mxu0 %v50
    %v149 = vpop.f32.mrb[0].mxu0
    %v150 = vadd.f32 0.0, %v149
    %v151 = vpop.f32.mrb[0].mxu0
    %v152 = vpop.f32.mrb[0].mxu0
    %v153 = vpop.f32.mrb[0].mxu0
    %154 = vdwg.mxu0
    %v155 = vadd.f32 %v49, %v150
    %156 = vst [vmem:[#allocation9] sm:$0xff] %v155
    // Predicated region
    $region26: #{tpu_custom_call.1} parent=1 // pred_check
      %p157 = pneg %p44
    $region27: #{tpu_custom_call.1} parent=1 // pred_check_branch
      %159 = sbr.rel (%p157) target = $region29
    $region28: #{tpu_custom_call.1} parent=1 // pred_region
      %v160 = vld [vmem:[#allocation9] sm:$0xff]
      %v161 = vld [vmem:[%s3] sm:$0x1]
      %v163 = vlaneseq
      %v164 = vshrl.u32 %v163, 7
      %v165 = vsub.s32 0, %v164
      %v166 = vrot.slane %v161, %v165
      %v168 = vadd.f32 %v160, %v166
      %v169 = vmax.f32 %v168, 0.0
      %170 = vst [vmem:[#allocation9] sm:$0xff] %v169
    $region29: #{tpu_custom_call.1} parent=1 // pred_fallthru
      _
    // Predicated region
    $region30: #{tpu_custom_call.1} parent=1 // pred_check
      _
    $region31: #{tpu_custom_call.1} parent=1 // pred_check_branch
      %172 = sbr.rel (0) target = $region33
    $region32: #{tpu_custom_call.1} parent=1 // pred_region
      %s174 = ssub.s32 128, 128
      %175 = vsyncadd [#allocation6], %s174
      %s177 = sshll.u32 [#allocation9], 4
      %s178 = int_to_ptr.vmem [resolvable:$true] %s177
      %180 = dma.vmem_to_hbm [thread:$0]  %s178, 128, %s4, [#allocation6]
    $region33: #{tpu_custom_call.1} parent=1 // pred_fallthru
      _
    // Predicated region
    $region34: #{tpu_custom_call.1} parent=1 // pred_check
      _
    $region35: #{tpu_custom_call.1} parent=1 // pred_check_branch
      %182 = sbr.rel (0) target = $region37
    $region36: #{tpu_custom_call.1} parent=1 // pred_region
      %183 = dma.done [#allocation6], 128
    $region37: #{tpu_custom_call.1} parent=1 // pred_fallthru
      _
    %184 = vsyncpa [#allocation5], 1
    %185 = vsyncpa [#allocation8], 1
    %186 = vsyncpa [#allocation6], 1

</llo_original>
